<compile_context>
chip_gen: v6e
topology: v6e:2x2x1
jax: 0.10.0
libtpu: 0.0.40
codegen_flags: <defaults>
</compile_context>

<pallas_src>
import jax
import jax.numpy as jnp
from jax.experimental import pallas as pl
from jax.experimental.pallas import tpu as pltpu

IN_FEATURES = 10
OUT_FEATURES = 2


def linear_kernel(w_ref, b_ref, x_ref, o_ref):
    # w_ref: (2, 10)  f32 in VMEM (PyTorch weight layout, used as vectors)
    # b_ref: (2,)     f32 in SMEM (scalar reads)
    # x_ref: (TB, 10) f32 in VMEM (batch-major tile, native HBM layout)
    # o_ref: (TB, 2)  f32 in VMEM (batch-major output tile)
    x = x_ref[...]          # single full-tile load, reused for both outputs
    w = w_ref[...]          # (2, 10)
    for j in range(OUT_FEATURES):
        # Full-tile VPU multiply (weight row broadcast over sublanes) + XLU
        # lane reduction over the 10 feature lanes; bias added as an SMEM
        # scalar.  No MXU: K=10, N=2 would be <1% MXU utilization.
        y = jnp.sum(x * w[j:j + 1, :], axis=1, keepdims=True) + b_ref[j]
        o_ref[:, j:j + 1] = y.astype(o_ref.dtype)   # direct slice store


def _choose_tile(batch, tb_max):
    """Largest sublane-aligned batch tile, preferring >= 2 grid steps
    (so the 'parallel' axis can use both v7x TensorCores)."""
    if batch <= 16:
        return batch                      # single full-extent tile is legal
    half = -(-batch // 2)                 # ceil(batch / 2): at least 2 tiles
    tb = max(8, (min(tb_max, half) // 8) * 8)
    return min(tb, batch)


def dummy_model_forward(x, weight, bias, *, tb_max=8192):
    """x: (B, 10) f32, weight: (2, 10) f32, bias: (2,) f32 -> (B, 2) f32.

    No wrapper-side transpose / pad / slice: the kernel's HBM traffic is the
    48 bytes/row minimum for this op.
    """
    B = x.shape[0]
    tb = _choose_tile(B, tb_max)
    n_tiles = pl.cdiv(B, tb)

    return pl.pallas_call(
        linear_kernel,
        out_shape=jax.ShapeDtypeStruct((B, OUT_FEATURES), x.dtype),
        grid_spec=pltpu.PrefetchScalarGridSpec(
            num_scalar_prefetch=0,
            grid=(n_tiles,),
            in_specs=[
                # Whole weight every step (80 B, negligible), full-dim block.
                pl.BlockSpec((OUT_FEATURES, IN_FEATURES), lambda i: (0, 0)),
                # Bias as SMEM scalars.
                pl.BlockSpec(memory_space=pltpu.MemorySpace.SMEM),
                # Batch-major x tile; last dim equals the full array dim (10).
                pl.BlockSpec((tb, IN_FEATURES), lambda i: (i, 0)),
            ],
            out_specs=pl.BlockSpec((tb, OUT_FEATURES), lambda i: (i, 0)),
        ),
        compiler_params=pltpu.CompilerParams(
            dimension_semantics=("parallel",),
            # Explicit scoped-VMEM budget: ~16 MiB used at tb=8192 with
            # double buffering; raising the limit avoids v5e's 16 MiB default
            # becoming a silent tile-size ceiling.
            vmem_limit_bytes=32 * 1024 * 1024,
        ),
    )(weight, bias, x)


if __name__ == "__main__":
    key = jax.random.PRNGKey(0)
    kx, kw, kb = jax.random.split(key, 3)

    # Deterministic parameter init (same shapes as nn.Linear(10, 2)).
    bound = 1.0 / (IN_FEATURES ** 0.5)
    weight = jax.random.uniform(
        kw, (OUT_FEATURES, IN_FEATURES), jnp.float32, -bound, bound)
    bias = jax.random.uniform(kb, (OUT_FEATURES,), jnp.float32, -bound, bound)

    # Small batch; auto-tiler picks tb=128 -> two grid steps.
    B = 256
    x = jax.random.normal(kx, (B, IN_FEATURES), jnp.float32)

    out = dummy_model_forward(x, weight, bias)
    out = jax.block_until_ready(out)

    # Reference check against plain JAX (same math as torch's Linear).
    ref = x @ weight.T + bias
    assert out.shape == (B, OUT_FEATURES)
    assert jnp.allclose(out, ref, atol=1e-5, rtol=1e-5)

    print("KERNEL_OK")
</pallas_src>

<mosaic_0001>
module attributes {stable_mosaic.version = 11 : i64} {
  func.func @linear_kernel(%arg0: i32, %arg1: memref<2x10xf32, #tpu.memory_space<vmem>>, %arg2: memref<2xf32, #tpu.memory_space<smem>>, %arg3: memref<128x10xf32, #tpu.memory_space<vmem>>, %arg4: memref<128x2xf32, #tpu.memory_space<vmem>>) attributes {dimension_semantics = [#tpu.dimension_semantics<parallel>], iteration_bounds = array<i64: 2>, scalar_prefetch = 0 : i64, scratch_operands = 0 : i64, tpu.core_type = #tpu.core_type<tc>, window_params = [{pipeline_mode = #tpu.pipeline_mode<synchronous>, transform_indices = @transform_0, window_bounds = array<i64: 2, 10>}, {transform_indices = @transform_1, window_bounds = array<i64: 2>}, {transform_indices = @transform_2, window_bounds = array<i64: 128, 10>}, {transform_indices = @transform_3, window_bounds = array<i64: 128, 2>}]} {
    %c0 = arith.constant 0 : index
    %c0_0 = arith.constant 0 : index
    %0 = vector.load %arg3[%c0, %c0_0] : memref<128x10xf32, #tpu.memory_space<vmem>>, vector<128x10xf32>
    %c0_1 = arith.constant 0 : index
    %c0_2 = arith.constant 0 : index
    %1 = vector.load %arg1[%c0_1, %c0_2] : memref<2x10xf32, #tpu.memory_space<vmem>>, vector<2x10xf32>
    %2 = vector.extract_strided_slice %1 {offsets = [0, 0], sizes = [1, 10], strides = [1, 1]} : vector<2x10xf32> to vector<1x10xf32>
    %3 = vector.broadcast %2 : vector<1x10xf32> to vector<128x10xf32>
    %4 = arith.mulf %0, %3 : vector<128x10xf32>
    %cst = arith.constant dense<0.000000e+00> : vector<128xf32>
    %5 = vector.multi_reduction <add>, %4, %cst [1] : vector<128x10xf32> to vector<128xf32>
    %6 = vector.shape_cast %5 : vector<128xf32> to vector<128x1xf32>
    %c0_3 = arith.constant 0 : index
    %7 = memref.load %arg2[%c0_3] : memref<2xf32, #tpu.memory_space<smem>>
    %8 = vector.broadcast %7 : f32 to vector<128x1xf32>
    %9 = arith.addf %6, %8 : vector<128x1xf32>
    %c0_4 = arith.constant 0 : index
    %c0_5 = arith.constant 0 : index
    %10 = vector.load %arg4[%c0_4, %c0_5] : memref<128x2xf32, #tpu.memory_space<vmem>>, vector<128x1xf32>
    tpu.vector_store %arg4[%c0_4, %c0_5], %9 {strides = array<i32>} : memref<128x2xf32, #tpu.memory_space<vmem>>, vector<128x1xf32>,
    %11 = vector.extract_strided_slice %1 {offsets = [1, 0], sizes = [1, 10], strides = [1, 1]} : vector<2x10xf32> to vector<1x10xf32>
    %12 = vector.broadcast %11 : vector<1x10xf32> to vector<128x10xf32>
    %13 = arith.mulf %0, %12 : vector<128x10xf32>
    %cst_6 = arith.constant dense<0.000000e+00> : vector<128xf32>
    %14 = vector.multi_reduction <add>, %13, %cst_6 [1] : vector<128x10xf32> to vector<128xf32>
    %15 = vector.shape_cast %14 : vector<128xf32> to vector<128x1xf32>
    %c1 = arith.constant 1 : index
    %16 = memref.load %arg2[%c1] : memref<2xf32, #tpu.memory_space<smem>>
    %17 = vector.broadcast %16 : f32 to vector<128x1xf32>
    %18 = arith.addf %15, %17 : vector<128x1xf32>
    %c0_7 = arith.constant 0 : index
    %c1_8 = arith.constant 1 : index
    %19 = vector.load %arg4[%c0_7, %c1_8] : memref<128x2xf32, #tpu.memory_space<vmem>>, vector<128x1xf32>
    tpu.vector_store %arg4[%c0_7, %c1_8], %18 {strides = array<i32>} : memref<128x2xf32, #tpu.memory_space<vmem>>, vector<128x1xf32>,
    return
  }
  func.func @transform_0(%arg0: i32) -> (i32, i32) {
    %c0_i32 = arith.constant 0 : i32
    %c0_i32_0 = arith.constant 0 : i32
    %c0_i32_1 = arith.constant 0 : i32
    return %c0_i32, %c0_i32_0 : i32, i32
  }
  func.func @transform_1(%arg0: i32) -> i32 {
    %c0_i32 = arith.constant 0 : i32
    %c0_i32_0 = arith.constant 0 : i32
    return %c0_i32 : i32
  }
  func.func @transform_2(%arg0: i32) -> (i32, i32) {
    %c0_i32 = arith.constant 0 : i32
    %c0_i32_0 = arith.constant 0 : i32
    return %arg0, %c0_i32 : i32, i32
  }
  func.func @transform_3(%arg0: i32) -> (i32, i32) {
    %c0_i32 = arith.constant 0 : i32
    %c0_i32_0 = arith.constant 0 : i32
    return %arg0, %c0_i32 : i32, i32
  }
}

</mosaic_0001>

<llo_original>
// kernel: tpu_custom_call.1
$region0: #{tpu_custom_call.1}
  #allocation0 [shape = 'u32[]', space=smem, size = 0x4, offset = 0x4, fixed_abs, tag = 'smem constant byte address 0x4 - core index']
  #allocation1 [shape = 'u32[144,128]{1,0:T(1,128)}', space=vmem, size = 0x12000, scoped, tag = 'internal scratch']
  %s0 = inlined_call_operand.vmem [shape: f32[2,10], index: 0, kind: input, shape index: {}]
  %s1 = inlined_call_operand.vmem [shape: f32[2], index: 1, kind: input, shape index: {}]
  %s2 = inlined_call_operand.vmem [shape: f32[256,10], index: 2, kind: input, shape index: {}]
  %s3 = inlined_call_operand.vmem [shape: f32[256,2], index: 3, kind: output, shape index: {}]
  %s4 = sld [smem:[#allocation0]]
  $region49: #{tpu_custom_call.1} parent=0
    _
  %s6 = ssub.s32 1, %s4
  %s7 = scalar_select 0, %s6, %s4
  $region1: #{tpu_custom_call.1} parent=0
    #allocation2 [shape = 'u8[512]{0}', space=smem, size = 0x200, scoped, tag = 'input window, operand 1, single buffered']
    #allocation3 [shape = 's32[2]{0}', space=sflag, size = 0x8, scoped, tag = 'scoped memory for tpu_custom_call.1']
    %8 = vsyncpa [#allocation3], 0
    loop: start=0, step=1, limit=4
    $region2: #{tpu_custom_call.1} parent=1 // loop_pre_header
      _
    $region3: #{tpu_custom_call.1} parent=1 // loop_header
      %s10 = sphi 0, %s14
      %p11 = scmp.ge.s32.totalorder %s10, 4
      %s18 = sphi 0, %s18
      %s20 = sphi 0, %s18
      %s21 = sphi 0, %s20
      %s35 = sphi 0, %s21
      %s39 = sphi 0, %s39
      %s41 = sphi 0, %s39
      %s42 = sphi 0, %s41
      %s56 = sphi 0, %s42
      %s62 = sphi 0, %s64
      %s65 = sphi 0, %s62
      %s66 = sphi 0, %s65
      %s82 = sphi 0, %s66
      %s88 = sphi 0, %s90
      %s91 = sphi 0, %s88
      %s92 = sphi 0, %s91
      %s108 = sphi 0, %s92
    $region4: #{tpu_custom_call.1} parent=1 // loop_header_branch
      %13 = sbr.rel (%p11) target = $region8
    $region5: #{tpu_custom_call.1} parent=1 // loop_body
      %s15 = ssub.s32 %s10, 1
      %s16 = ssub.s32 %s10, 2
      %s17 = sadd.s32 %s10, 1
      %s19 = sadd.s32 %s18, 1
      %p22 = scmp.eq.s32.totalorder %s10, 1
      %p23 = scmp.ne.s32.totalorder %s18, %s20
      %p24 = scmp.eq.s32.totalorder %s10, 0
      %p25 = por %p23, %p24
      %p26 = scmp.ne.s32.totalorder %s18, %s20
      %p27 = scmp.eq.s32.totalorder %s15, 1
      %p28 = por %p26, %p27
      %p29 = scmp.ne.s32.totalorder %s20, %s21
      %p30 = scmp.eq.s32.totalorder %s15, 0
      %p31 = por %p29, %p30
      %p32 = scmp.ne.s32.totalorder %s20, %s21
      %p33 = scmp.eq.s32.totalorder %s16, 1
      %p34 = por %p32, %p33
      %p36 = scmp.ne.s32.totalorder %s21, %s35
      %p37 = scmp.eq.s32.totalorder %s16, 0
      %p38 = por %p36, %p37
      %s40 = sadd.s32 %s39, 1
      %p43 = scmp.eq.s32.totalorder %s10, 1
      %p44 = scmp.ne.s32.totalorder %s39, %s41
      %p45 = scmp.eq.s32.totalorder %s10, 0
      %p46 = por %p44, %p45
      %p47 = scmp.ne.s32.totalorder %s39, %s41
      %p48 = scmp.eq.s32.totalorder %s15, 1
      %p49 = por %p47, %p48
      %p50 = scmp.ne.s32.totalorder %s41, %s42
      %p51 = scmp.eq.s32.totalorder %s15, 0
      %p52 = por %p50, %p51
      %p53 = scmp.ne.s32.totalorder %s41, %s42
      %p54 = scmp.eq.s32.totalorder %s16, 1
      %p55 = por %p53, %p54
      %p57 = scmp.ne.s32.totalorder %s42, %s56
      %p58 = scmp.eq.s32.totalorder %s16, 0
      %p59 = por %p57, %p58
      %s60 = ssub.s32 %s10, %s17
      %p61 = scmp.eq.s32.totalorder %s60, 0
      %s63 = sadd.s32 %s62, 1
      %s64 = scalar_select %p61, %s62, %s63
      %p67 = pneg %p61
      %p68 = scmp.eq.s32.totalorder %s10, 1
      %p69 = por %p67, %p68
      %p70 = scmp.ne.s32.totalorder %s62, %s65
      %p71 = scmp.eq.s32.totalorder %s10, 0
      %p72 = por %p70, %p71
      %p73 = scmp.ne.s32.totalorder %s62, %s65
      %p74 = scmp.eq.s32.totalorder %s15, 1
      %p75 = por %p73, %p74
      %p76 = scmp.ne.s32.totalorder %s65, %s66
      %p77 = scmp.eq.s32.totalorder %s15, 0
      %p78 = por %p76, %p77
      %p79 = scmp.ne.s32.totalorder %s65, %s66
      %p80 = scmp.eq.s32.totalorder %s16, 1
      %p81 = por %p79, %p80
      %p83 = scmp.ne.s32.totalorder %s66, %s82
      %p84 = scmp.eq.s32.totalorder %s16, 0
      %p85 = por %p83, %p84
      %s86 = ssub.s32 %s10, %s17
      %p87 = scmp.eq.s32.totalorder %s86, 0
      %s89 = sadd.s32 %s88, 1
      %s90 = scalar_select %p87, %s88, %s89
      %p93 = pneg %p87
      %p94 = scmp.eq.s32.totalorder %s10, 1
      %p95 = por %p93, %p94
      %p96 = scmp.ne.s32.totalorder %s88, %s91
      %p97 = scmp.eq.s32.totalorder %s10, 0
      %p98 = por %p96, %p97
      %p99 = scmp.ne.s32.totalorder %s88, %s91
      %p100 = scmp.eq.s32.totalorder %s15, 1
      %p101 = por %p99, %p100
      %p102 = scmp.ne.s32.totalorder %s91, %s92
      %p103 = scmp.eq.s32.totalorder %s15, 0
      %p104 = por %p102, %p103
      %p105 = scmp.ne.s32.totalorder %s91, %s92
      %p106 = scmp.eq.s32.totalorder %s16, 1
      %p107 = por %p105, %p106
      %p109 = scmp.ne.s32.totalorder %s92, %s108
      %p110 = scmp.eq.s32.totalorder %s16, 0
      %p111 = por %p109, %p110
      %p112 = scmp.le.s32.totalorder 1, %s10
      %p113 = scmp.lt.s32.totalorder %s10, 3
      %p114 = pnand %p112, %p113
      %p115 = pneg %p114
      // Predicated region
      $region9: #{tpu_custom_call.1} parent=5 // pred_check
        _
      $region10: #{tpu_custom_call.1} parent=5 // pred_check_branch
        %117 = sbr.rel (%p114) target = $region12
      $region11: #{tpu_custom_call.1} parent=5 // pred_region
        %s118 = ssub.s32 %s10, 1
        // Predicated region
        $region13: #{tpu_custom_call.1} parent=11 // pred_check
          %p119 = pneg %p31
        $region14: #{tpu_custom_call.1} parent=11 // pred_check_branch
          %121 = sbr.rel (%p119) target = $region16
        $region15: #{tpu_custom_call.1} parent=11 // pred_region
          _
        $region16: #{tpu_custom_call.1} parent=11 // pred_fallthru
          _
        // Predicated region
        $region17: #{tpu_custom_call.1} parent=11 // pred_check
          %p122 = pneg %p52
        $region18: #{tpu_custom_call.1} parent=11 // pred_check_branch
          %124 = sbr.rel (%p122) target = $region20
        $region19: #{tpu_custom_call.1} parent=11 // pred_region
          %s126 = ssub.s32 16, 16
          %127 = vsyncadd [#allocation3], %s126
          %s129 = sshll.u32 %s1, 4
          %s130 = int_to_ptr.vmem [resolvable:$true] %s129
          %132 = dma.vmem_to_smem %s130, 16, [#allocation2], [#allocation3]
        $region20: #{tpu_custom_call.1} parent=11 // pred_fallthru
          _
      $region12: #{tpu_custom_call.1} parent=5 // pred_fallthru
        _
      %p133 = scmp.lt.s32.totalorder %s10, 2
      // Predicated region
      $region21: #{tpu_custom_call.1} parent=5 // pred_check
        %p134 = pneg %p133
      $region22: #{tpu_custom_call.1} parent=5 // pred_check_branch
        %136 = sbr.rel (%p134) target = $region24
      $region23: #{tpu_custom_call.1} parent=5 // pred_region
        // Predicated region
        $region25: #{tpu_custom_call.1} parent=23 // pred_check
          %p137 = pneg %p72
        $region26: #{tpu_custom_call.1} parent=23 // pred_check_branch
          %139 = sbr.rel (%p137) target = $region28
        $region27: #{tpu_custom_call.1} parent=23 // pred_region
          %s140 = smul.u32 16, %s10
          %p141 = scmp.lt.s32.totalorder %s140, 31
          %s142 = scalar_select %p141, %s140, 31
          %s143 = smul.addr %s142, 8
          %s144 = scalar_lea.vmem %s2, %s143
          %s145 = smul.u32 16, %s10
        $region28: #{tpu_custom_call.1} parent=23 // pred_fallthru
          _
      $region24: #{tpu_custom_call.1} parent=5 // pred_fallthru
        _
      %p146 = scmp.le.s32.totalorder 1, %s10
      %p147 = scmp.lt.s32.totalorder %s10, 3
      %p148 = pnand %p146, %p147
      %p149 = pneg %p148
      // Predicated region
      $region29: #{tpu_custom_call.1} parent=5 // pred_check
        _
      $region30: #{tpu_custom_call.1} parent=5 // pred_check_branch
        %151 = sbr.rel (%p148) target = $region32
      $region31: #{tpu_custom_call.1} parent=5 // pred_region
        %s152 = ssub.s32 %s10, 1
        // Predicated region
        $region33: #{tpu_custom_call.1} parent=31 // pred_check
          %p153 = pneg %p52
        $region34: #{tpu_custom_call.1} parent=31 // pred_check_branch
          %155 = sbr.rel (%p153) target = $region36
        $region35: #{tpu_custom_call.1} parent=31 // pred_region
          %156 = dma.done [#allocation3], 16
        $region36: #{tpu_custom_call.1} parent=31 // pred_fallthru
          _
        %157 = sfence
        %p158 = pneg %p31
        %p159 = pneg %p28
        %p160 = pneg %p52
        %p161 = pneg %p49
        %s162 = smul.u32 16, %s15
        %p163 = scmp.lt.s32.totalorder %s162, 31
        %s164 = scalar_select %p163, %s162, 31
        %s165 = smul.addr %s164, 8
        %s166 = scalar_lea.vmem %s2, %s165
        %p167 = pneg %p78
        %p168 = pneg %p75
        %p169 = pneg %p104
        %p170 = pneg %p101
        %s171 = smul.u32 16, %s15
        %p172 = scmp.lt.s32.totalorder %s171, 31
        %s173 = scalar_select %p172, %s171, 31
        %s174 = smul.addr %s173, 8
        %s175 = scalar_lea.vmem %s3, %s174
        %s176 = smul.u32 16, %s15
        %p177 = scmp.lt.s32.totalorder %s176, 31
        %s178 = scalar_select %p177, %s176, 31
        %s179 = smul.addr %s178, 8
        %s180 = scalar_lea.vmem %s2, %s179
        %s181 = smul.u32 16, %s15
        %s182 = smul.u32 16, %s15
        %p183 = scmp.lt.s32.totalorder %s182, 31
        %s184 = scalar_select %p183, %s182, 31
        %s185 = smul.addr %s184, 8
        %s186 = scalar_lea.vmem %s3, %s185
        %s187 = smul.u32 16, %s15
        %v188 = vld [vmem:[%s180] sm:$0xff]
        %v189 = vld [vmem:[%s180 + $0x8] sm:$0xff]
        %v190 = vld [vmem:[%s180 + $0x10] sm:$0xff]
        %v191 = vld [vmem:[%s180 + $0x18] sm:$0xff]
        %v192 = vld [vmem:[%s180 + $0x20] sm:$0xff]
        %v193 = vld [vmem:[%s180 + $0x28] sm:$0xff]
        %v194 = vld [vmem:[%s180 + $0x30] sm:$0xff]
        %v195 = vld [vmem:[%s180 + $0x38] sm:$0xff]
        %v196 = vld [vmem:[%s180 + $0x40] sm:$0xff]
        %v197 = vld [vmem:[%s180 + $0x48] sm:$0xff]
        %v198 = vld [vmem:[%s180 + $0x50] sm:$0xff]
        %v199 = vld [vmem:[%s180 + $0x58] sm:$0xff]
        %v200 = vld [vmem:[%s180 + $0x60] sm:$0xff]
        %v201 = vld [vmem:[%s180 + $0x68] sm:$0xff]
        %v202 = vld [vmem:[%s180 + $0x70] sm:$0xff]
        %v203 = vld [vmem:[%s180 + $0x78] sm:$0xff]
        %v204 = vld [vmem:[%s0] sm:$0x3]
        %v205 = vlaneseq
        %v206 = vshrl.u32 %v205, 7
        %v207 = vsub.s32 0, %v206
        %v208 = vrot.slane %v204, %v207
        %v209 = vmul.f32 %v188, %v208
        %v210 = vmul.f32 %v189, %v208
        %v211 = vmul.f32 %v190, %v208
        %v212 = vmul.f32 %v191, %v208
        %v213 = vmul.f32 %v192, %v208
        %v214 = vmul.f32 %v193, %v208
        %v215 = vmul.f32 %v194, %v208
        %v216 = vmul.f32 %v195, %v208
        %v217 = vmul.f32 %v196, %v208
        %v218 = vmul.f32 %v197, %v208
        %v219 = vmul.f32 %v198, %v208
        %v220 = vmul.f32 %v199, %v208
        %v221 = vmul.f32 %v200, %v208
        %v222 = vmul.f32 %v201, %v208
        %v223 = vmul.f32 %v202, %v208
        %v224 = vmul.f32 %v203, %v208
        %vm225 = vcmask 80896
        %v226 = vsel %vm225, %v209, 0.0
        %227 = vadd.xlane.f32.xlu0 %v226
        %v228 = vpop.xlane.xlu0 %227
        %v229 = vsel %vm225, %v210, 0.0
        %230 = vadd.xlane.f32.xlu0 %v229
        %v231 = vpop.xlane.xlu0 %230
        %v232 = vsel %vm225, %v211, 0.0
        %233 = vadd.xlane.f32.xlu0 %v232
        %v234 = vpop.xlane.xlu0 %233
        %v235 = vsel %vm225, %v212, 0.0
        %236 = vadd.xlane.f32.xlu0 %v235
        %v237 = vpop.xlane.xlu0 %236
        %v238 = vsel %vm225, %v213, 0.0
        %239 = vadd.xlane.f32.xlu0 %v238
        %v240 = vpop.xlane.xlu0 %239
        %v241 = vsel %vm225, %v214, 0.0
        %242 = vadd.xlane.f32.xlu0 %v241
        %v243 = vpop.xlane.xlu0 %242
        %v244 = vsel %vm225, %v215, 0.0
        %245 = vadd.xlane.f32.xlu0 %v244
        %v246 = vpop.xlane.xlu0 %245
        %v247 = vsel %vm225, %v216, 0.0
        %248 = vadd.xlane.f32.xlu0 %v247
        %v249 = vpop.xlane.xlu0 %248
        %v250 = vsel %vm225, %v217, 0.0
        %251 = vadd.xlane.f32.xlu0 %v250
        %v252 = vpop.xlane.xlu0 %251
        %v253 = vsel %vm225, %v218, 0.0
        %254 = vadd.xlane.f32.xlu0 %v253
        %v255 = vpop.xlane.xlu0 %254
        %v256 = vsel %vm225, %v219, 0.0
        %257 = vadd.xlane.f32.xlu0 %v256
        %v258 = vpop.xlane.xlu0 %257
        %v259 = vsel %vm225, %v220, 0.0
        %260 = vadd.xlane.f32.xlu0 %v259
        %v261 = vpop.xlane.xlu0 %260
        %v262 = vsel %vm225, %v221, 0.0
        %263 = vadd.xlane.f32.xlu0 %v262
        %v264 = vpop.xlane.xlu0 %263
        %v265 = vsel %vm225, %v222, 0.0
        %266 = vadd.xlane.f32.xlu0 %v265
        %v267 = vpop.xlane.xlu0 %266
        %v268 = vsel %vm225, %v223, 0.0
        %269 = vadd.xlane.f32.xlu0 %v268
        %v270 = vpop.xlane.xlu0 %269
        %v271 = vsel %vm225, %v224, 0.0
        %272 = vadd.xlane.f32.xlu0 %v271
        %v273 = vpop.xlane.xlu0 %272
        %s274 = sld [smem:[#allocation2]]
        %v275 = vstv %s274
        %v276 = vadd.f32 %v228, %v275
        %v277 = vadd.f32 %v231, %v275
        %v278 = vadd.f32 %v234, %v275
        %v279 = vadd.f32 %v237, %v275
        %v280 = vadd.f32 %v240, %v275
        %v281 = vadd.f32 %v243, %v275
        %v282 = vadd.f32 %v246, %v275
        %v283 = vadd.f32 %v249, %v275
        %v284 = vadd.f32 %v252, %v275
        %v285 = vadd.f32 %v255, %v275
        %v286 = vadd.f32 %v258, %v275
        %v287 = vadd.f32 %v261, %v275
        %v288 = vadd.f32 %v264, %v275
        %v289 = vadd.f32 %v267, %v275
        %v290 = vadd.f32 %v270, %v275
        %v291 = vadd.f32 %v273, %v275
        %vm292 = vcmask 7168
        %293 = vst.msk [vmem:[%s186] sm:$0xff] %vm292, %v276
        %294 = vst.msk [vmem:[%s186 + $0x8] sm:$0xff] %vm292, %v277
        %295 = vst.msk [vmem:[%s186 + $0x10] sm:$0xff] %vm292, %v278
        %296 = vst.msk [vmem:[%s186 + $0x18] sm:$0xff] %vm292, %v279
        %297 = vst.msk [vmem:[%s186 + $0x20] sm:$0xff] %vm292, %v280
        %298 = vst.msk [vmem:[%s186 + $0x28] sm:$0xff] %vm292, %v281
        %299 = vst.msk [vmem:[%s186 + $0x30] sm:$0xff] %vm292, %v282
        %300 = vst.msk [vmem:[%s186 + $0x38] sm:$0xff] %vm292, %v283
        %301 = vst.msk [vmem:[%s186 + $0x40] sm:$0xff] %vm292, %v284
        %302 = vst.msk [vmem:[%s186 + $0x48] sm:$0xff] %vm292, %v285
        %303 = vst.msk [vmem:[%s186 + $0x50] sm:$0xff] %vm292, %v286
        %304 = vst.msk [vmem:[%s186 + $0x58] sm:$0xff] %vm292, %v287
        %305 = vst.msk [vmem:[%s186 + $0x60] sm:$0xff] %vm292, %v288
        %306 = vst.msk [vmem:[%s186 + $0x68] sm:$0xff] %vm292, %v289
        %307 = vst.msk [vmem:[%s186 + $0x70] sm:$0xff] %vm292, %v290
        %308 = vst.msk [vmem:[%s186 + $0x78] sm:$0xff] %vm292, %v291
        %v309 = vlaneseq
        %v310 = vshrl.u32 %v309, 7
        %v311 = vsub.s32 1, %v310
        %v312 = vrot.slane %v204, %v311
        %v313 = vmul.f32 %v188, %v312
        %v314 = vmul.f32 %v189, %v312
        %v315 = vmul.f32 %v190, %v312
        %v316 = vmul.f32 %v191, %v312
        %v317 = vmul.f32 %v192, %v312
        %v318 = vmul.f32 %v193, %v312
        %v319 = vmul.f32 %v194, %v312
        %v320 = vmul.f32 %v195, %v312
        %v321 = vmul.f32 %v196, %v312
        %v322 = vmul.f32 %v197, %v312
        %v323 = vmul.f32 %v198, %v312
        %v324 = vmul.f32 %v199, %v312
        %v325 = vmul.f32 %v200, %v312
        %v326 = vmul.f32 %v201, %v312
        %v327 = vmul.f32 %v202, %v312
        %v328 = vmul.f32 %v203, %v312
        %v329 = vsel %vm225, %v313, 0.0
        %330 = vadd.xlane.f32.xlu0 %v329
        %v331 = vpop.xlane.xlu0 %330
        %v332 = vsel %vm225, %v314, 0.0
        %333 = vadd.xlane.f32.xlu0 %v332
        %v334 = vpop.xlane.xlu0 %333
        %v335 = vsel %vm225, %v315, 0.0
        %336 = vadd.xlane.f32.xlu0 %v335
        %v337 = vpop.xlane.xlu0 %336
        %v338 = vsel %vm225, %v316, 0.0
        %339 = vadd.xlane.f32.xlu0 %v338
        %v340 = vpop.xlane.xlu0 %339
        %v341 = vsel %vm225, %v317, 0.0
        %342 = vadd.xlane.f32.xlu0 %v341
        %v343 = vpop.xlane.xlu0 %342
        %v344 = vsel %vm225, %v318, 0.0
        %345 = vadd.xlane.f32.xlu0 %v344
        %v346 = vpop.xlane.xlu0 %345
        %v347 = vsel %vm225, %v319, 0.0
        %348 = vadd.xlane.f32.xlu0 %v347
        %v349 = vpop.xlane.xlu0 %348
        %v350 = vsel %vm225, %v320, 0.0
        %351 = vadd.xlane.f32.xlu0 %v350
        %v352 = vpop.xlane.xlu0 %351
        %v353 = vsel %vm225, %v321, 0.0
        %354 = vadd.xlane.f32.xlu0 %v353
        %v355 = vpop.xlane.xlu0 %354
        %v356 = vsel %vm225, %v322, 0.0
        %357 = vadd.xlane.f32.xlu0 %v356
        %v358 = vpop.xlane.xlu0 %357
        %v359 = vsel %vm225, %v323, 0.0
        %360 = vadd.xlane.f32.xlu0 %v359
        %v361 = vpop.xlane.xlu0 %360
        %v362 = vsel %vm225, %v324, 0.0
        %363 = vadd.xlane.f32.xlu0 %v362
        %v364 = vpop.xlane.xlu0 %363
        %v365 = vsel %vm225, %v325, 0.0
        %366 = vadd.xlane.f32.xlu0 %v365
        %v367 = vpop.xlane.xlu0 %366
        %v368 = vsel %vm225, %v326, 0.0
        %369 = vadd.xlane.f32.xlu0 %v368
        %v370 = vpop.xlane.xlu0 %369
        %v371 = vsel %vm225, %v327, 0.0
        %372 = vadd.xlane.f32.xlu0 %v371
        %v373 = vpop.xlane.xlu0 %372
        %v374 = vsel %vm225, %v328, 0.0
        %375 = vadd.xlane.f32.xlu0 %v374
        %v376 = vpop.xlane.xlu0 %375
        %s377 = sld [smem:[#allocation2 + $0x1]]
        %v378 = vstv %s377
        %v379 = vadd.f32 %v331, %v378
        %v380 = vadd.f32 %v334, %v378
        %v381 = vadd.f32 %v337, %v378
        %v382 = vadd.f32 %v340, %v378
        %v383 = vadd.f32 %v343, %v378
        %v384 = vadd.f32 %v346, %v378
        %v385 = vadd.f32 %v349, %v378
        %v386 = vadd.f32 %v352, %v378
        %v387 = vadd.f32 %v355, %v378
        %v388 = vadd.f32 %v358, %v378
        %v389 = vadd.f32 %v361, %v378
        %v390 = vadd.f32 %v364, %v378
        %v391 = vadd.f32 %v367, %v378
        %v392 = vadd.f32 %v370, %v378
        %v393 = vadd.f32 %v373, %v378
        %v394 = vadd.f32 %v376, %v378
        %vm395 = vcmask 15368
        %396 = vst.msk [vmem:[%s186] sm:$0xff] %vm395, %v379
        %397 = vst.msk [vmem:[%s186 + $0x8] sm:$0xff] %vm395, %v380
        %398 = vst.msk [vmem:[%s186 + $0x10] sm:$0xff] %vm395, %v381
        %399 = vst.msk [vmem:[%s186 + $0x18] sm:$0xff] %vm395, %v382
        %400 = vst.msk [vmem:[%s186 + $0x20] sm:$0xff] %vm395, %v383
        %401 = vst.msk [vmem:[%s186 + $0x28] sm:$0xff] %vm395, %v384
        %402 = vst.msk [vmem:[%s186 + $0x30] sm:$0xff] %vm395, %v385
        %403 = vst.msk [vmem:[%s186 + $0x38] sm:$0xff] %vm395, %v386
        %404 = vst.msk [vmem:[%s186 + $0x40] sm:$0xff] %vm395, %v387
        %405 = vst.msk [vmem:[%s186 + $0x48] sm:$0xff] %vm395, %v388
        %406 = vst.msk [vmem:[%s186 + $0x50] sm:$0xff] %vm395, %v389
        %407 = vst.msk [vmem:[%s186 + $0x58] sm:$0xff] %vm395, %v390
        %408 = vst.msk [vmem:[%s186 + $0x60] sm:$0xff] %vm395, %v391
        %409 = vst.msk [vmem:[%s186 + $0x68] sm:$0xff] %vm395, %v392
        %410 = vst.msk [vmem:[%s186 + $0x70] sm:$0xff] %vm395, %v393
        %411 = vst.msk [vmem:[%s186 + $0x78] sm:$0xff] %vm395, %v394
        %s412 = smul.u32 16, %s15
        %p413 = scmp.lt.s32.totalorder %s412, 31
        %s414 = scalar_select %p413, %s412, 31
        %s415 = smul.addr %s414, 8
        %s416 = scalar_lea.vmem %s3, %s415
        // Predicated region
        $region37: #{tpu_custom_call.1} parent=31 // pred_check
          %p417 = pneg %p101
        $region38: #{tpu_custom_call.1} parent=31 // pred_check_branch
          %419 = sbr.rel (%p417) target = $region40
        $region39: #{tpu_custom_call.1} parent=31 // pred_region
          %s420 = smul.u32 16, %s15
        $region40: #{tpu_custom_call.1} parent=31 // pred_fallthru
          _
      $region32: #{tpu_custom_call.1} parent=5 // pred_fallthru
        _
      %p421 = scmp.le.s32.totalorder 2, %s10
      // Predicated region
      $region41: #{tpu_custom_call.1} parent=5 // pred_check
        %p422 = pneg %p421
      $region42: #{tpu_custom_call.1} parent=5 // pred_check_branch
        %424 = sbr.rel (%p422) target = $region44
      $region43: #{tpu_custom_call.1} parent=5 // pred_region
        %s425 = ssub.s32 %s10, 2
        // Predicated region
        $region45: #{tpu_custom_call.1} parent=43 // pred_check
          %p426 = pneg %p107
        $region46: #{tpu_custom_call.1} parent=43 // pred_check_branch
          %428 = sbr.rel (%p426) target = $region48
        $region47: #{tpu_custom_call.1} parent=43 // pred_region
          %s429 = smul.u32 16, %s16
          %p430 = scmp.lt.s32.totalorder %s429, 31
          %s431 = scalar_select %p430, %s429, 31
          %s432 = smul.addr %s431, 8
          %s433 = scalar_lea.vmem %s3, %s432
        $region48: #{tpu_custom_call.1} parent=43 // pred_fallthru
          _
      $region44: #{tpu_custom_call.1} parent=5 // pred_fallthru
        _
    $region6: #{tpu_custom_call.1} parent=1 // loop_footer
      %s14 = sadd.s32 1, %s10
    $region7: #{tpu_custom_call.1} parent=1 // loop_footer_branch
      %9 = sbr.rel target = $region3
    $region8: #{tpu_custom_call.1} parent=1 // loop_exit
      _
    %434 = vsyncpa [#allocation3], 1
    %s435 = scalar_lea.sflag [#allocation3], 1
    %436 = vsyncpa %s435, 1

</llo_original>
